<compile_context>
chip_gen: v6e
topology: v6e:2x2x1
jax: 0.10.0
libtpu: 0.0.40
codegen_flags: <defaults>
</compile_context>

<pallas_src>
import math

import jax
import jax.numpy as jnp
from jax.experimental import pallas as pl
from jax.experimental.pallas import tpu as pltpu


# ---------------------------------------------------------------------------
# Buffer construction (module __init__, plain JAX glue — not a kernel).
# ---------------------------------------------------------------------------
def build_pe(d_model: int, height: int, width: int) -> jnp.ndarray:
    """Replicates PositionalEncoding2D.__init__ buffer construction exactly."""
    assert height == width, "PyTorch broadcasting in __init__ requires H == W"
    assert width == d_model // 2, "PyTorch broadcasting in __init__ requires W == d_model//2"

    y_pos = jnp.arange(height, dtype=jnp.float32)[:, None]          # (H, 1)
    x_pos = jnp.arange(width, dtype=jnp.float32)[None, :]           # (1, W)
    div_term = jnp.exp(
        jnp.arange(0, d_model, 2, dtype=jnp.float32)
        * -(math.log(10000.0) / d_model)
    )                                                                # (D/2,)

    sin_part = jnp.sin(y_pos * div_term[None, :])                    # (H, D/2)
    cos_part = jnp.cos(x_pos * div_term)                             # (1, W) == (1, D/2)

    half = d_model // 2
    pe = jnp.zeros((height, width, d_model), dtype=jnp.float32)
    # Same right-aligned broadcast PyTorch performs on assignment:
    #   (H, D/2) -> (1, H, D/2) -> (H, W, D/2)   (needs H == W)
    pe = pe.at[:, :, 0::2].set(
        jnp.broadcast_to(sin_part[None, :, :], (height, width, half))
    )
    #   (1, D/2) -> (1, 1, D/2) -> (H, W, D/2)
    pe = pe.at[:, :, 1::2].set(
        jnp.broadcast_to(cos_part[None, :, :], (height, width, half))
    )
    return pe.reshape(height * width, d_model)                       # (H*W, D)


def prepare_pe_row(pe: jnp.ndarray, seq_len: int, dtype) -> jnp.ndarray:
    """Init-time prep (done ONCE per model config): slice to seq_len, cast to
    the activation dtype, and flatten to a lane-dense (1, seq_len*d_model) row.
    Hoisted out of the per-call forward so it is not an extra per-step XLA
    slice+convert dispatch."""
    hw, d = pe.shape
    assert seq_len <= hw, f"sequence length {seq_len} exceeds positional table size {hw}"
    return pe[:seq_len, :].astype(dtype).reshape(1, seq_len * d)


# ---------------------------------------------------------------------------
# Kernel: lane-dense broadcast add on a flattened (B, S*D) view.
# ---------------------------------------------------------------------------
def _pe_add_kernel(x_ref, pe_ref, o_ref):
    # x_ref / o_ref: (TB, TF) lane-dense tiles (TF multiple of 128 or the full
    # feature extent -> unmasked vst's except on a possible last partial block).
    # pe_ref: (1, TF) row shared across the batch; the only broadcast left is a
    # cheap sublane broadcast.
    o_ref[...] = x_ref[...] + pe_ref[...]


# ---------------------------------------------------------------------------
# Tile selection.
#
# Per-step VMEM cost is roughly 2*(x_tile + out_tile) + 2*pe_tile (double
# buffering).  A ~2 MiB x tile keeps the total under ~12 MiB worst case, safe
# under the scoped-VMEM defaults on v5e (16 MiB), v6e (32 MiB) and v7x
# (32 MiB scoped / 64 MiB physical), while being past the tile size where an
# f32 elementwise add saturates HBM bandwidth.
# ---------------------------------------------------------------------------
_X_TILE_BYTES_BUDGET = 2 * 1024 * 1024   # per x tile (Pallas double-buffers it)
_SMALL_INPUT_BYTES = 256 * 1024          # below this, plain XLA add is cheaper
_MIN_SPLIT_BYTES = 1 * 1024 * 1024       # force >=2 grid steps above this (v7x: 2 TCs)


def _sublane_pack(dtype) -> int:
    # Native sublane packing: 8 rows for 32-bit, 16 for 16-bit, 32 for 8-bit.
    itemsize = jnp.dtype(dtype).itemsize
    return 8 * max(1, 4 // max(1, itemsize))


def _round_down(x: int, m: int) -> int:
    return (x // m) * m


def _plan_tiles(B: int, F: int, dtype):
    """Returns (mode, tb, tf, grid)."""
    itemsize = jnp.dtype(dtype).itemsize
    pack = _sublane_pack(dtype)
    f_bytes = F * itemsize
    total_bytes = B * f_bytes

    if f_bytes <= _X_TILE_BYTES_BUDGET:
        # Preferred case: full feature extent per block (one long contiguous
        # HBM segment per batch row), tile along batch to fill the budget.
        if B <= pack:
            tb = B                                      # full extent (always legal)
        else:
            max_tb = max(pack, _round_down(_X_TILE_BYTES_BUDGET // f_bytes, pack))
            tb = B if max_tb >= B else max_tb           # full extent or pack-aligned
        gb = pl.cdiv(B, tb)
        # v7x has 2 TensorCores and shards "parallel" grid axes across them:
        # keep at least 2 grid steps when the input is big enough to matter.
        if gb == 1 and total_bytes > _MIN_SPLIT_BYTES and B > pack:
            tb = max(pack, _round_down((B + 1) // 2, pack))
            gb = pl.cdiv(B, tb)
        return "batch", tb, F, (gb,)

    # Feature axis does not fit one block: keep the batch tile minimal
    # (HBM contiguity is per row anyway), tile the feature axis as large as the
    # budget allows, and keep the pe block resident across the inner batch axis.
    tb = B if B <= pack else pack
    max_tf = max(128, _round_down(_X_TILE_BYTES_BUDGET // (tb * itemsize), 128))
    tf = 0
    if F % 128 == 0:
        t = min(max_tf, F)
        while t >= 128:
            if F % t == 0:
                tf = t
                break
            t -= 128
    if tf == 0:
        # No dividing tile within budget: keep the budget and let the last
        # (partial) block be masked instead of silently blowing up VMEM.
        tf = min(max_tf, pl.cdiv(F, 128) * 128)
    gf = pl.cdiv(F, tf)          # always >= 2 here since F*itemsize > budget
    gb = pl.cdiv(B, tb)
    return "feat", tb, tf, (gf, gb)


# ---------------------------------------------------------------------------
# Forward:  x + pe[:S, :][None]   (pe_row pre-prepared at init time)
# ---------------------------------------------------------------------------
def positional_encoding_2d_forward(
    x: jnp.ndarray,
    pe_row: jnp.ndarray,
    *,
    donate_x: bool = False,
    force_pallas: bool = False,
) -> jnp.ndarray:
    """Equivalent of forward(x) = x + pe[:x.size(1), :].unsqueeze(0)."""
    B, S, D = x.shape
    F = S * D
    assert pe_row.shape == (1, F), (
        f"pe_row must be prepared for seq_len={S}, d_model={D}; got {pe_row.shape}"
    )
    assert pe_row.dtype == x.dtype, "prepare_pe_row must use the activation dtype"

    itemsize = jnp.dtype(x.dtype).itemsize
    x2d = x.reshape(B, F)        # pure reshape, lane-dense view

    if not force_pallas and B * F * itemsize < _SMALL_INPUT_BYTES:
        # Tiny workload: pallas_call launch + pipeline prologue/epilogue dwarfs
        # the microsecond of work; a fused XLA elementwise add is strictly cheaper.
        return (x2d + pe_row).reshape(B, S, D)

    mode, tb, tf, grid = _plan_tiles(B, F, x.dtype)

    if mode == "batch":
        # TF == F: pe block index is constant -> fetched once, fully resident.
        in_specs = [
            pl.BlockSpec((tb, F), lambda i: (i, 0)),     # x tile
            pl.BlockSpec((1, F), lambda i: (0, 0)),      # pe row (resident)
        ]
        out_spec = pl.BlockSpec((tb, F), lambda i: (i, 0))
        semantics = ("parallel",)
    else:
        # grid = (feature tiles, batch tiles); batch is innermost so the pe
        # block index is unchanged across consecutive steps (no re-DMA of pe).
        in_specs = [
            pl.BlockSpec((tb, tf), lambda j, i: (i, j)),  # x tile
            pl.BlockSpec((1, tf), lambda j, i: (0, j)),   # pe slice (held across i)
        ]
        out_spec = pl.BlockSpec((tb, tf), lambda j, i: (i, j))
        semantics = ("parallel", "parallel")

    cost = pl.CostEstimate(
        flops=B * F,
        transcendentals=0,
        bytes_accessed=2 * B * F * itemsize + F * itemsize,
    )

    out2d = pl.pallas_call(
        _pe_add_kernel,
        out_shape=jax.ShapeDtypeStruct((B, F), x.dtype),
        grid_spec=pltpu.PrefetchScalarGridSpec(
            num_scalar_prefetch=0,
            grid=grid,
            in_specs=in_specs,
            out_specs=out_spec,
        ),
        compiler_params=pltpu.CompilerParams(dimension_semantics=semantics),
        cost_estimate=cost,
        input_output_aliases=({0: 0} if donate_x else {}),
    )(x2d, pe_row)

    return out2d.reshape(B, S, D)


if __name__ == "__main__":
    # Module config consistent with the __init__ broadcasting constraints:
    #   d_model = 32, height = width = 16  (so H*W = 256)
    d_model, height, width = 32, 16, 16
    pe = build_pe(d_model, height, width)

    key = jax.random.PRNGKey(0)
    k1, k2 = jax.random.split(key)

    # --- small shape: force the Pallas path so the kernel itself is exercised
    #     (the default wrapper would route such a tiny input to plain XLA).
    B1, S1 = 2, 64
    x1 = jax.random.normal(k1, (B1, S1, d_model), dtype=jnp.float32)
    pe_row1 = prepare_pe_row(pe, S1, x1.dtype)
    out1 = jax.block_until_ready(
        positional_encoding_2d_forward(x1, pe_row1, force_pallas=True)
    )
    ref1 = x1 + pe[:S1, :][None, :, :]
    assert out1.shape == (B1, S1, d_model)
    assert jnp.allclose(out1, ref1, atol=1e-6), "mismatch vs reference (small)"

    # --- larger shape: exercises the batch-tiled path and the >=2-grid-step
    #     split (2 MiB total -> two 1 MiB x tiles).
    B2, S2 = 64, 256
    x2 = jax.random.normal(k2, (B2, S2, d_model), dtype=jnp.float32)
    pe_row2 = prepare_pe_row(pe, S2, x2.dtype)
    out2 = jax.block_until_ready(positional_encoding_2d_forward(x2, pe_row2))
    ref2 = x2 + pe[:S2, :][None, :, :]
    assert out2.shape == (B2, S2, d_model)
    assert jnp.allclose(out2, ref2, atol=1e-6), "mismatch vs reference (large)"

    print("KERNEL_OK")
</pallas_src>

<mosaic_0001>
module attributes {stable_mosaic.version = 11 : i64} {
  func.func @_pe_add_kernel(%arg0: i32, %arg1: memref<2x2048xf32, #tpu.memory_space<vmem>>, %arg2: memref<1x2048xf32, #tpu.memory_space<vmem>>, %arg3: memref<2x2048xf32, #tpu.memory_space<vmem>>) attributes {dimension_semantics = [#tpu.dimension_semantics<parallel>], iteration_bounds = array<i64: 1>, scalar_prefetch = 0 : i64, scratch_operands = 0 : i64, tpu.core_type = #tpu.core_type<tc>, window_params = [{transform_indices = @transform_0, window_bounds = array<i64: 2, 2048>}, {pipeline_mode = #tpu.pipeline_mode<synchronous>, transform_indices = @transform_1, window_bounds = array<i64: 1, 2048>}, {transform_indices = @transform_2, window_bounds = array<i64: 2, 2048>}]} {
    %c0 = arith.constant 0 : index
    %c0_0 = arith.constant 0 : index
    %0 = vector.load %arg1[%c0, %c0_0] : memref<2x2048xf32, #tpu.memory_space<vmem>>, vector<2x2048xf32>
    %c0_1 = arith.constant 0 : index
    %c0_2 = arith.constant 0 : index
    %1 = vector.load %arg2[%c0_1, %c0_2] : memref<1x2048xf32, #tpu.memory_space<vmem>>, vector<1x2048xf32>
    %2 = vector.broadcast %1 : vector<1x2048xf32> to vector<2x2048xf32>
    %3 = arith.addf %0, %2 : vector<2x2048xf32>
    %c0_3 = arith.constant 0 : index
    %c0_4 = arith.constant 0 : index
    %4 = vector.load %arg3[%c0_3, %c0_4] : memref<2x2048xf32, #tpu.memory_space<vmem>>, vector<2x2048xf32>
    tpu.vector_store %arg3[%c0_3, %c0_4], %3 {strides = array<i32>} : memref<2x2048xf32, #tpu.memory_space<vmem>>, vector<2x2048xf32>,
    return
  }
  func.func @transform_0(%arg0: i32) -> (i32, i32) {
    %c0_i32 = arith.constant 0 : i32
    %c0_i32_0 = arith.constant 0 : i32
    return %arg0, %c0_i32 : i32, i32
  }
  func.func @transform_1(%arg0: i32) -> (i32, i32) {
    %c0_i32 = arith.constant 0 : i32
    %c0_i32_0 = arith.constant 0 : i32
    %c0_i32_1 = arith.constant 0 : i32
    return %c0_i32, %c0_i32_0 : i32, i32
  }
  func.func @transform_2(%arg0: i32) -> (i32, i32) {
    %c0_i32 = arith.constant 0 : i32
    %c0_i32_0 = arith.constant 0 : i32
    return %arg0, %c0_i32 : i32, i32
  }
}

</mosaic_0001>

<llo_original>
// kernel: tpu_custom_call.1
$region0: #{tpu_custom_call.1}
  #allocation0 [shape = 'u32[]', space=smem, size = 0x4, offset = 0x4, fixed_abs, tag = 'smem constant byte address 0x4 - core index']
  #allocation1 [shape = 'u32[144,128]{1,0:T(1,128)}', space=vmem, size = 0x12000, scoped, tag = 'internal scratch']
  %s0 = inlined_call_operand.hbm [shape: f32[2,2048], index: 0, kind: input, shape index: {}]
  %s1 = inlined_call_operand.hbm [shape: f32[1,2048], index: 1, kind: input, shape index: {}]
  %s2 = inlined_call_operand.hbm [shape: f32[2,2048], index: 2, kind: output, shape index: {}]
  %s3 = sld [smem:[#allocation0]]
  $region26: #{tpu_custom_call.1} parent=0
    _
  %s5 = ssub.s32 1, %s3
  %s6 = scalar_select 0, %s5, %s3
  $region1: #{tpu_custom_call.1} parent=0
    #allocation2 [shape = 'u8[16384]{0}', space=vmem, size = 0x4000, scoped, tag = 'input window, operand 0, single buffered']
    #allocation3 [shape = 's32[1]{0}', space=sflag, size = 0x4, scoped, tag = 'scoped memory for tpu_custom_call.1']
    #allocation4 [shape = 's32[1]{0}', space=sflag, size = 0x4, scoped, tag = 'scoped memory for tpu_custom_call.1']
    #allocation5 [shape = 'u8[8192]{0}', space=vmem, size = 0x2000, scoped, tag = 'input window, operand 1, single buffered']
    #allocation6 [shape = 's32[1]{0}', space=sflag, size = 0x4, scoped, tag = 'scoped memory for tpu_custom_call.1']
    #allocation7 [shape = 'u8[16384]{0}', space=vmem, size = 0x4000, scoped, tag = 'output window, operand 0, single buffered']
    %7 = vsyncpa [#allocation3], 0
    %8 = vsyncpa [#allocation6], 0
    %9 = vsyncpa [#allocation4], 0
    // Predicated region
    $region2: #{tpu_custom_call.1} parent=1 // pred_check
      _
    $region3: #{tpu_custom_call.1} parent=1 // pred_check_branch
      %11 = sbr.rel (0) target = $region5
    $region4: #{tpu_custom_call.1} parent=1 // pred_region
      %s13 = ssub.s32 512, 512
      %14 = vsyncadd [#allocation3], %s13
      %s16 = sshll.u32 [#allocation2], 4
      %s17 = int_to_ptr.vmem [resolvable:$true] %s16
      %19 = dma.hbm_to_vmem [thread:$0]  %s0, 512, %s17, [#allocation3]
    $region5: #{tpu_custom_call.1} parent=1 // pred_fallthru
      _
    // Predicated region
    $region6: #{tpu_custom_call.1} parent=1 // pred_check
      _
    $region7: #{tpu_custom_call.1} parent=1 // pred_check_branch
      %21 = sbr.rel (0) target = $region9
    $region8: #{tpu_custom_call.1} parent=1 // pred_region
      %s23 = ssub.s32 256, 256
      %24 = vsyncadd [#allocation6], %s23
      %s26 = sshll.u32 [#allocation5], 4
      %s27 = int_to_ptr.vmem [resolvable:$true] %s26
      %29 = dma.hbm_to_vmem [thread:$0]  %s1, 256, %s27, [#allocation6]
    $region9: #{tpu_custom_call.1} parent=1 // pred_fallthru
      _
    // Predicated region
    $region10: #{tpu_custom_call.1} parent=1 // pred_check
      _
    $region11: #{tpu_custom_call.1} parent=1 // pred_check_branch
      %31 = sbr.rel (0) target = $region13
    $region12: #{tpu_custom_call.1} parent=1 // pred_region
      %32 = dma.done [#allocation3], 512
    $region13: #{tpu_custom_call.1} parent=1 // pred_fallthru
      _
    // Predicated region
    $region14: #{tpu_custom_call.1} parent=1 // pred_check
      _
    $region15: #{tpu_custom_call.1} parent=1 // pred_check_branch
      %34 = sbr.rel (0) target = $region17
    $region16: #{tpu_custom_call.1} parent=1 // pred_region
      %35 = dma.done [#allocation6], 256
    $region17: #{tpu_custom_call.1} parent=1 // pred_fallthru
      _
    %v36 = vld [vmem:[#allocation2] sm:$0xff]
    %v37 = vld [vmem:[#allocation2 + $0x8] sm:$0xff]
    %v38 = vld [vmem:[#allocation2 + $0x10] sm:$0xff]
    %v39 = vld [vmem:[#allocation2 + $0x18] sm:$0xff]
    %v40 = vld [vmem:[#allocation5] sm:$0xff]
    %v41 = vld [vmem:[#allocation5 + $0x8] sm:$0xff]
    %v44 = vlaneseq
    %v45 = vshrl.u32 %v44, 7
    %v46 = vsub.s32 0, %v45
    %v47 = vrot.slane %v40, %v46
    %v48 = vlaneseq
    %v49 = vshrl.u32 %v48, 7
    %v50 = vsub.s32 1, %v49
    %v51 = vrot.slane %v40, %v50
    %v52 = vlaneseq
    %v53 = vshrl.u32 %v52, 7
    %v54 = vsub.s32 2, %v53
    %v55 = vrot.slane %v40, %v54
    %v56 = vlaneseq
    %v57 = vshrl.u32 %v56, 7
    %v58 = vsub.s32 3, %v57
    %v59 = vrot.slane %v40, %v58
    %v60 = vlaneseq
    %v61 = vshrl.u32 %v60, 7
    %v62 = vsub.s32 4, %v61
    %v63 = vrot.slane %v40, %v62
    %v64 = vlaneseq
    %v65 = vshrl.u32 %v64, 7
    %v66 = vsub.s32 5, %v65
    %v67 = vrot.slane %v40, %v66
    %v68 = vlaneseq
    %v69 = vshrl.u32 %v68, 7
    %v70 = vsub.s32 6, %v69
    %v71 = vrot.slane %v40, %v70
    %v72 = vlaneseq
    %v73 = vshrl.u32 %v72, 7
    %v74 = vsub.s32 7, %v73
    %v75 = vrot.slane %v40, %v74
    %v76 = vlaneseq
    %v77 = vshrl.u32 %v76, 7
    %v78 = vsub.s32 0, %v77
    %v79 = vrot.slane %v41, %v78
    %v80 = vlaneseq
    %v81 = vshrl.u32 %v80, 7
    %v82 = vsub.s32 1, %v81
    %v83 = vrot.slane %v41, %v82
    %v84 = vlaneseq
    %v85 = vshrl.u32 %v84, 7
    %v86 = vsub.s32 2, %v85
    %v87 = vrot.slane %v41, %v86
    %v88 = vlaneseq
    %v89 = vshrl.u32 %v88, 7
    %v90 = vsub.s32 3, %v89
    %v91 = vrot.slane %v41, %v90
    %v92 = vlaneseq
    %v93 = vshrl.u32 %v92, 7
    %v94 = vsub.s32 4, %v93
    %v95 = vrot.slane %v41, %v94
    %v96 = vlaneseq
    %v97 = vshrl.u32 %v96, 7
    %v98 = vsub.s32 5, %v97
    %v99 = vrot.slane %v41, %v98
    %v100 = vlaneseq
    %v101 = vshrl.u32 %v100, 7
    %v102 = vsub.s32 6, %v101
    %v103 = vrot.slane %v41, %v102
    %v104 = vlaneseq
    %v105 = vshrl.u32 %v104, 7
    %v106 = vsub.s32 7, %v105
    %v107 = vrot.slane %v41, %v106
    %v108 = vcombine.low %v47, %v51
    %v109 = vcombine.low %v55, %v59
    %v111 = vunpack.c.l.s4 1983009808
    %v112 = vunpack.c.0.s8 %v111
    %v113 = vlaneseq
    %v114 = vshrl.u32 %v113, 7
    %v115 = vsub.s32 %v112, %v114
    %v116 = vrot.slane %v108, %v115
    %v118 = vunpack.c.l.s4 1983009808
    %v119 = vunpack.c.0.s8 %v118
    %v120 = vlaneseq
    %v121 = vshrl.u32 %v120, 7
    %v122 = vsub.s32 %v119, %v121
    %v123 = vrot.slane %v109, %v122
    %v124 = vcombine.low %v116, %v123
    %v125 = vcombine.low %v63, %v67
    %v126 = vcombine.low %v71, %v75
    %v128 = vunpack.c.l.s4 1983009808
    %v129 = vunpack.c.0.s8 %v128
    %v130 = vlaneseq
    %v131 = vshrl.u32 %v130, 7
    %v132 = vsub.s32 %v129, %v131
    %v133 = vrot.slane %v125, %v132
    %v135 = vunpack.c.l.s4 1983009808
    %v136 = vunpack.c.0.s8 %v135
    %v137 = vlaneseq
    %v138 = vshrl.u32 %v137, 7
    %v139 = vsub.s32 %v136, %v138
    %v140 = vrot.slane %v126, %v139
    %v141 = vcombine.low %v133, %v140
    %v142 = vcombine.low %v79, %v83
    %v143 = vcombine.low %v87, %v91
    %v145 = vunpack.c.l.s4 1983009808
    %v146 = vunpack.c.0.s8 %v145
    %v147 = vlaneseq
    %v148 = vshrl.u32 %v147, 7
    %v149 = vsub.s32 %v146, %v148
    %v150 = vrot.slane %v142, %v149
    %v152 = vunpack.c.l.s4 1983009808
    %v153 = vunpack.c.0.s8 %v152
    %v154 = vlaneseq
    %v155 = vshrl.u32 %v154, 7
    %v156 = vsub.s32 %v153, %v155
    %v157 = vrot.slane %v143, %v156
    %v158 = vcombine.low %v150, %v157
    %v159 = vcombine.low %v95, %v99
    %v160 = vcombine.low %v103, %v107
    %v162 = vunpack.c.l.s4 1983009808
    %v163 = vunpack.c.0.s8 %v162
    %v164 = vlaneseq
    %v165 = vshrl.u32 %v164, 7
    %v166 = vsub.s32 %v163, %v165
    %v167 = vrot.slane %v159, %v166
    %v169 = vunpack.c.l.s4 1983009808
    %v170 = vunpack.c.0.s8 %v169
    %v171 = vlaneseq
    %v172 = vshrl.u32 %v171, 7
    %v173 = vsub.s32 %v170, %v172
    %v174 = vrot.slane %v160, %v173
    %v175 = vcombine.low %v167, %v174
    %v180 = vadd.f32 %v36, %v124
    %v181 = vadd.f32 %v37, %v141
    %v182 = vadd.f32 %v38, %v158
    %v183 = vadd.f32 %v39, %v175
    %184 = vst [vmem:[#allocation7] sm:$0xff] %v180
    %185 = vst [vmem:[#allocation7 + $0x8] sm:$0xff] %v181
    %186 = vst [vmem:[#allocation7 + $0x10] sm:$0xff] %v182
    %187 = vst [vmem:[#allocation7 + $0x18] sm:$0xff] %v183
    // Predicated region
    $region18: #{tpu_custom_call.1} parent=1 // pred_check
      _
    $region19: #{tpu_custom_call.1} parent=1 // pred_check_branch
      %189 = sbr.rel (0) target = $region21
    $region20: #{tpu_custom_call.1} parent=1 // pred_region
      %s191 = ssub.s32 512, 512
      %192 = vsyncadd [#allocation4], %s191
      %s194 = sshll.u32 [#allocation7], 4
      %s195 = int_to_ptr.vmem [resolvable:$true] %s194
      %197 = dma.vmem_to_hbm [thread:$0]  %s195, 512, %s2, [#allocation4]
    $region21: #{tpu_custom_call.1} parent=1 // pred_fallthru
      _
    // Predicated region
    $region22: #{tpu_custom_call.1} parent=1 // pred_check
      _
    $region23: #{tpu_custom_call.1} parent=1 // pred_check_branch
      %199 = sbr.rel (0) target = $region25
    $region24: #{tpu_custom_call.1} parent=1 // pred_region
      %200 = dma.done [#allocation4], 512
    $region25: #{tpu_custom_call.1} parent=1 // pred_fallthru
      _
    %201 = vsyncpa [#allocation3], 1
    %202 = vsyncpa [#allocation6], 1
    %203 = vsyncpa [#allocation4], 1

</llo_original>
